<compile_context>
chip_gen: v7x
topology: tpu7x:2x2x1
jax: 0.10.0
libtpu: 0.0.40
codegen_flags: <defaults>
</compile_context>

<pallas_src>
import functools

import numpy as np

import jax
import jax.numpy as jnp
from jax.experimental import pallas as pl
from jax.experimental.pallas import tpu as pltpu


def cnn2_fused_kernel(x_ref, s_ref, pk_ref, w1p_ref, o_ref):
    """Fused Conv1d + BatchNorm1d + Tanh + MaxPool1d + (fc ∘ fc2 folded) Linear.

    x_ref   : (B, L)      bf16 raw flattened input (read once)
    s_ref   : (L, 2*dim)  bf16 structured conv weight (im2col/deinterleave folded in);
                          columns = [even | odd] halves, each channel-major (c*Tp+tp)
    pk_ref  : (3, OUTW)   f32 packed small params:
                          row0 = gamma|0, row1 = beta|0,
                          row2 = [fc_b | fc_b@fc2+fc2_b | 0] (combined output bias)
    w1p_ref : (dim, OUTW) bf16 fc weight transposed, with fc2 folded into column
                          int_dim (rank-1), zero-padded to OUTW lanes
    o_ref   : (B, OUTW)   f32 output slab: lanes [0:int_dim] = feat, lane int_dim = logit
    """
    B = x_ref.shape[0]
    two_dim = s_ref.shape[1]
    dim = two_dim // 2
    C = 16                                  # Conv1d(1, 16, ...)
    Tp = dim // C                           # pooled time steps per channel
    inv_count = 1.0 / float(B * (two_dim // C))   # 1 / (B*T) elements per channel

    # Conv1d(kernel=stride=shell) straight into the lane-dense channel-major
    # [even | odd] pre-pool layout.  bf16 x bf16 -> f32 accumulate on the MXU.
    # (Conv bias omitted: a per-channel constant cancels under train-mode BatchNorm.)
    conv = jnp.dot(x_ref[...], s_ref[...], preferred_element_type=jnp.float32)  # (B, 2*dim)

    # 0/1 channel indicators generated in-kernel (iota + compares only; no div/mod,
    # no HBM traffic).  ind[j, c] = 1 iff pre-pool column j belongs to channel c.
    def channel_indicator(shape, j_axis, c_axis):
        jj = jax.lax.broadcasted_iota(jnp.int32, shape, j_axis)
        cc = jax.lax.broadcasted_iota(jnp.int32, shape, c_axis)
        lo = cc * Tp
        hit = jnp.logical_or(
            jnp.logical_and(jj >= lo, jj < lo + Tp),              # even half
            jnp.logical_and(jj >= lo + dim, jj < lo + dim + Tp))  # odd half
        return jnp.where(hit, 1.0, 0.0)

    r_mat = channel_indicator((two_dim, C), 0, 1)    # (2*dim, C)
    rt_mat = channel_indicator((C, two_dim), 1, 0)   # (C, 2*dim)

    # BatchNorm1d(16) training-mode batch statistics: ONE merged stat matmul.
    colsum = jnp.sum(conv, axis=0, keepdims=True)                 # (1, 2*dim)
    sqsum = jnp.sum(conv * conv, axis=0, keepdims=True)           # (1, 2*dim)
    moms = jnp.dot(jnp.concatenate([colsum, sqsum], axis=0), r_mat,
                   preferred_element_type=jnp.float32)            # (2, C)
    mean = moms[0:1, :] * inv_count                               # (1, C)
    var = jnp.maximum(moms[1:2, :] * inv_count - mean * mean, 0.0)  # clamp (review)

    gamma = pk_ref[0:1, :C]
    beta = pk_ref[1:2, :C]
    scale_c = gamma * jax.lax.rsqrt(var + 1e-5)      # gamma folded into rsqrt scale
    shift_c = beta - mean * scale_c
    # ONE merged lane-broadcast matmul for [scale ; shift].
    ss = jnp.dot(jnp.concatenate([scale_c, shift_c], axis=0), rt_mat,
                 preferred_element_type=jnp.float32)              # (2, 2*dim)

    # Affine + Tanh (kept f32: v5e has no bf16 EUP/VPU; negligible at B=2 anyway).
    y = jnp.tanh(conv * ss[0:1, :] + ss[1:2, :])                  # (B, 2*dim)

    # MaxPool1d(2, 2): even/odd time-steps live in the two lane-aligned halves.
    pooled = jnp.maximum(y[:, :dim], y[:, dim:])     # (B, dim) == torch flatten order

    # fc and fc2 in a single bf16 matmul (fc2 rank-1, folded into column int_dim of
    # w1p); one lane-dense store of the whole (B, OUTW) output slab.
    o_ref[...] = (jnp.dot(pooled.astype(jnp.bfloat16), w1p_ref[...],
                          preferred_element_type=jnp.float32) + pk_ref[2:3, :])


@functools.partial(jax.jit, static_argnames=("shell",))
def cnn2_forward(x, params, *, shell):
    B = x.shape[0]
    xf = x.reshape(B, -1).astype(jnp.float32)        # x.view(B, 1, -1) -> (B, L)
    L = xf.shape[1]
    C = 16
    if L % shell != 0:
        raise ValueError(f"input length {L} not divisible by shell={shell}")
    T = L // shell
    if T % 2 != 0:
        raise ValueError(f"conv output length {T} must be even for MaxPool1d(2,2)")
    Tp = T // 2
    dim = C * Tp
    int_dim, fc_in = params["fc_w"].shape
    if fc_in != dim:
        raise ValueError(f"fc expects in-dim {fc_in}, data implies dim={dim}")
    OUTW = ((int_dim + 1 + 127) // 128) * 128        # feat lanes + 1 logit lane, 128-aligned

    # ---- trace-time layout plumbing (weight side only; tiny) --------------------------
    # Pre-pool column j = o*dim + c*Tp + tp   (o = 0 even / 1 odd time-step)
    l_idx = np.arange(L)
    s_l = l_idx % shell
    t_l = l_idx // shell
    o_l = t_l % 2
    tp_l = t_l // 2
    j_idx = np.arange(2 * dim)
    o_j = j_idx // dim
    c_j = (j_idx % dim) // Tp
    tp_j = (j_idx % dim) % Tp
    match = (o_l[:, None] == o_j[None, :]) & (tp_l[:, None] == tp_j[None, :])   # (L, 2*dim)

    wc = params["conv_w"].reshape(C, shell).astype(jnp.float32)
    s_mat = jnp.where(jnp.asarray(match), wc[c_j[None, :], s_l[:, None]], 0.0)  # (L, 2*dim)
    # NOTE: params["conv_b"] deliberately unused — a per-channel additive bias cancels
    #       exactly under train-mode BatchNorm (reference_forward includes it and the
    #       outputs still match).

    # fc2 (rank-1) folded into the fc weight / bias -> one matmul in the kernel.
    fc_w = params["fc_w"].astype(jnp.float32)                  # (int_dim, dim)
    fc_b = params["fc_b"].astype(jnp.float32)                  # (int_dim,)
    fc2_vec = params["fc2_w"].reshape(-1).astype(jnp.float32)  # (int_dim,)
    w1p = jnp.zeros((dim, OUTW), jnp.float32)
    w1p = w1p.at[:, :int_dim].set(fc_w.T)
    w1p = w1p.at[:, int_dim].set(fc_w.T @ fc2_vec)

    pk = jnp.zeros((3, OUTW), jnp.float32)
    pk = pk.at[0, :C].set(params["bn_gamma"].astype(jnp.float32))
    pk = pk.at[1, :C].set(params["bn_beta"].astype(jnp.float32))
    pk = pk.at[2, :int_dim].set(fc_b)
    pk = pk.at[2, int_dim].set(fc_b @ fc2_vec + params["fc2_b"].astype(jnp.float32)[0])

    # bf16 storage for MXU operands (f32 accumulation inside the kernel).
    xf_bf = xf.astype(jnp.bfloat16)
    s_bf = s_mat.astype(jnp.bfloat16)
    w1p_bf = w1p.astype(jnp.bfloat16)

    out = pl.pallas_call(
        cnn2_fused_kernel,
        grid=(1,),
        in_specs=[
            pl.BlockSpec(xf_bf.shape, lambda i: (0, 0)),
            pl.BlockSpec(s_bf.shape, lambda i: (0, 0)),
            pl.BlockSpec(pk.shape, lambda i: (0, 0)),
            pl.BlockSpec(w1p_bf.shape, lambda i: (0, 0)),
        ],
        out_specs=pl.BlockSpec((B, OUTW), lambda i: (0, 0)),
        out_shape=jax.ShapeDtypeStruct((B, OUTW), jnp.float32),
        compiler_params=pltpu.CompilerParams(dimension_semantics=("arbitrary",)),
    )(xf_bf, s_bf, pk, w1p_bf)

    feat = out[:, :int_dim]                          # (B, int_dim)
    logit = out[:, int_dim]                          # (B,)
    return logit, feat


def reference_forward(x, params, *, shell):
    """Pure-JAX (f32) replica of the PyTorch forward (NCW), for correctness checking."""
    B = x.shape[0]
    xf = x.reshape(B, -1).astype(jnp.float32)
    L = xf.shape[1]
    C = 16
    T = L // shell
    patches = xf.reshape(B, T, shell)
    conv = jnp.einsum("bts,cs->bct", patches, params["conv_w"].reshape(C, shell))
    conv = conv + params["conv_b"][None, :, None]
    mean = conv.mean(axis=(0, 2), keepdims=True)
    var = ((conv - mean) ** 2).mean(axis=(0, 2), keepdims=True)
    y = (conv - mean) / jnp.sqrt(var + 1e-5)
    y = y * params["bn_gamma"][None, :, None] + params["bn_beta"][None, :, None]
    y = jnp.tanh(y)
    y = y.reshape(B, C, T // 2, 2).max(axis=-1)
    out = y.reshape(B, C * (T // 2))
    feat = out @ params["fc_w"].T + params["fc_b"]
    logit = feat @ params["fc2_w"].T + params["fc2_b"]
    return logit.reshape(-1), feat


if __name__ == "__main__":
    # Small shapes consistent with the module: x.view(B, 1, -1) -> L = 64,
    # shell = 4  => T = 16, after pool Tp = 8, dim = 16 * 8 = 128, int_dim = 32.
    B, shell, int_dim = 2, 4, 32
    L = 64
    dim = 16 * (L // shell // 2)

    key = jax.random.PRNGKey(0)
    kx, k1, k2, k3, k4, k5, k6, k7, k8 = jax.random.split(key, 9)

    x = jax.random.normal(kx, (B, 4, 16), dtype=jnp.float32)   # flattens to L = 64

    params = {
        "conv_w": jax.random.normal(k1, (16, 1, shell), dtype=jnp.float32) * 0.3,
        "conv_b": jax.random.normal(k2, (16,), dtype=jnp.float32) * 0.1,
        "bn_gamma": 1.0 + 0.1 * jax.random.normal(k3, (16,), dtype=jnp.float32),
        "bn_beta": 0.1 * jax.random.normal(k4, (16,), dtype=jnp.float32),
        "fc_w": jax.random.normal(k5, (int_dim, dim), dtype=jnp.float32) / jnp.sqrt(dim),
        "fc_b": 0.1 * jax.random.normal(k6, (int_dim,), dtype=jnp.float32),
        "fc2_w": jax.random.normal(k7, (1, int_dim), dtype=jnp.float32) / jnp.sqrt(int_dim),
        "fc2_b": 0.1 * jax.random.normal(k8, (1,), dtype=jnp.float32),
    }

    logit, feat = cnn2_forward(x, params, shell=shell)
    jax.block_until_ready((logit, feat))

    ref_logit, ref_feat = reference_forward(x, params, shell=shell)
    assert logit.shape == (B,) and feat.shape == (B, int_dim)
    # bf16 weight/activation storage on the MXU path (f32 accumulation) -> compare at
    # bf16-appropriate tolerances against the pure-f32 reference.
    assert jnp.allclose(logit, ref_logit, rtol=3e-2, atol=3e-2)
    assert jnp.allclose(feat, ref_feat, rtol=3e-2, atol=3e-2)

    print("KERNEL_OK")
</pallas_src>

<mosaic_0001>
module attributes {stable_mosaic.version = 11 : i64} {
  func.func @cnn2_fused_kernel(%arg0: i32, %arg1: memref<2x64xbf16, #tpu.memory_space<vmem>>, %arg2: memref<64x256xbf16, #tpu.memory_space<vmem>>, %arg3: memref<3x128xf32, #tpu.memory_space<vmem>>, %arg4: memref<128x128xbf16, #tpu.memory_space<vmem>>, %arg5: memref<2x128xf32, #tpu.memory_space<vmem>>) attributes {dimension_semantics = [#tpu.dimension_semantics<arbitrary>], iteration_bounds = array<i64: 1>, scalar_prefetch = 0 : i64, scratch_operands = 0 : i64, tpu.core_type = #tpu.core_type<tc>, window_params = [{pipeline_mode = #tpu.pipeline_mode<synchronous>, transform_indices = @transform_0, window_bounds = array<i64: 2, 64>}, {pipeline_mode = #tpu.pipeline_mode<synchronous>, transform_indices = @transform_1, window_bounds = array<i64: 64, 256>}, {pipeline_mode = #tpu.pipeline_mode<synchronous>, transform_indices = @transform_2, window_bounds = array<i64: 3, 128>}, {pipeline_mode = #tpu.pipeline_mode<synchronous>, transform_indices = @transform_3, window_bounds = array<i64: 128, 128>}, {pipeline_mode = #tpu.pipeline_mode<synchronous>, transform_indices = @transform_4, window_bounds = array<i64: 2, 128>}]} {
    %c0 = arith.constant 0 : index
    %c0_0 = arith.constant 0 : index
    %0 = vector.load %arg1[%c0, %c0_0] : memref<2x64xbf16, #tpu.memory_space<vmem>>, vector<2x64xbf16>
    %c0_1 = arith.constant 0 : index
    %c0_2 = arith.constant 0 : index
    %1 = vector.load %arg2[%c0_1, %c0_2] : memref<64x256xbf16, #tpu.memory_space<vmem>>, vector<64x256xbf16>
    %cst = arith.constant dense<0.000000e+00> : vector<2x256xf32>
    %2 = tpu.matmul %0, %1, %cst {dimension_numbers = #tpu.dot_dimension_numbers<[1], [0], [0], [1], [0, 0, 1, 1], [], []>} : vector<2x64xbf16>, vector<64x256xbf16>, vector<2x256xf32> -> vector<2x256xf32>
    %3 = tpu.iota {dimensions = array<i32: 0>} : vector<256x16xi32>
    %4 = tpu.iota {dimensions = array<i32: 1>} : vector<256x16xi32>
    %c8_i32 = arith.constant 8 : i32
    %5 = vector.broadcast %c8_i32 : i32 to vector<256x16xi32>
    %6 = arith.muli %4, %5 : vector<256x16xi32>
    %7 = arith.cmpi sge, %3, %6 : vector<256x16xi32>
    %c8_i32_3 = arith.constant 8 : i32
    %8 = vector.broadcast %c8_i32_3 : i32 to vector<256x16xi32>
    %9 = arith.addi %6, %8 : vector<256x16xi32>
    %10 = arith.cmpi slt, %3, %9 : vector<256x16xi32>
    %11 = arith.andi %7, %10 : vector<256x16xi1>
    %c128_i32 = arith.constant 128 : i32
    %12 = vector.broadcast %c128_i32 : i32 to vector<256x16xi32>
    %13 = arith.addi %6, %12 : vector<256x16xi32>
    %14 = arith.cmpi sge, %3, %13 : vector<256x16xi32>
    %c128_i32_4 = arith.constant 128 : i32
    %15 = vector.broadcast %c128_i32_4 : i32 to vector<256x16xi32>
    %16 = arith.addi %6, %15 : vector<256x16xi32>
    %c8_i32_5 = arith.constant 8 : i32
    %17 = vector.broadcast %c8_i32_5 : i32 to vector<256x16xi32>
    %18 = arith.addi %16, %17 : vector<256x16xi32>
    %19 = arith.cmpi slt, %3, %18 : vector<256x16xi32>
    %20 = arith.andi %14, %19 : vector<256x16xi1>
    %21 = arith.ori %11, %20 : vector<256x16xi1>
    %cst_6 = arith.constant 1.000000e+00 : f32
    %cst_7 = arith.constant 0.000000e+00 : f32
    %22 = vector.broadcast %cst_6 : f32 to vector<256x16xf32>
    %23 = vector.broadcast %cst_7 : f32 to vector<256x16xf32>
    %24 = arith.select %21, %22, %23 : vector<256x16xi1>, vector<256x16xf32>
    %25 = tpu.iota {dimensions = array<i32: 1>} : vector<16x256xi32>
    %26 = tpu.iota {dimensions = array<i32: 0>} : vector<16x256xi32>
    %c8_i32_8 = arith.constant 8 : i32
    %27 = vector.broadcast %c8_i32_8 : i32 to vector<16x256xi32>
    %28 = arith.muli %26, %27 : vector<16x256xi32>
    %29 = arith.cmpi sge, %25, %28 : vector<16x256xi32>
    %c8_i32_9 = arith.constant 8 : i32
    %30 = vector.broadcast %c8_i32_9 : i32 to vector<16x256xi32>
    %31 = arith.addi %28, %30 : vector<16x256xi32>
    %32 = arith.cmpi slt, %25, %31 : vector<16x256xi32>
    %33 = arith.andi %29, %32 : vector<16x256xi1>
    %c128_i32_10 = arith.constant 128 : i32
    %34 = vector.broadcast %c128_i32_10 : i32 to vector<16x256xi32>
    %35 = arith.addi %28, %34 : vector<16x256xi32>
    %36 = arith.cmpi sge, %25, %35 : vector<16x256xi32>
    %c128_i32_11 = arith.constant 128 : i32
    %37 = vector.broadcast %c128_i32_11 : i32 to vector<16x256xi32>
    %38 = arith.addi %28, %37 : vector<16x256xi32>
    %c8_i32_12 = arith.constant 8 : i32
    %39 = vector.broadcast %c8_i32_12 : i32 to vector<16x256xi32>
    %40 = arith.addi %38, %39 : vector<16x256xi32>
    %41 = arith.cmpi slt, %25, %40 : vector<16x256xi32>
    %42 = arith.andi %36, %41 : vector<16x256xi1>
    %43 = arith.ori %33, %42 : vector<16x256xi1>
    %cst_13 = arith.constant 1.000000e+00 : f32
    %cst_14 = arith.constant 0.000000e+00 : f32
    %44 = vector.broadcast %cst_13 : f32 to vector<16x256xf32>
    %45 = vector.broadcast %cst_14 : f32 to vector<16x256xf32>
    %46 = arith.select %43, %44, %45 : vector<16x256xi1>, vector<16x256xf32>
    %cst_15 = arith.constant dense<0.000000e+00> : vector<256xf32>
    %47 = vector.multi_reduction <add>, %2, %cst_15 [0] : vector<2x256xf32> to vector<256xf32>
    %48 = vector.shape_cast %47 : vector<256xf32> to vector<1x256xf32>
    %49 = arith.mulf %2, %2 : vector<2x256xf32>
    %cst_16 = arith.constant dense<0.000000e+00> : vector<256xf32>
    %50 = vector.multi_reduction <add>, %49, %cst_16 [0] : vector<2x256xf32> to vector<256xf32>
    %51 = vector.shape_cast %50 : vector<256xf32> to vector<1x256xf32>
    %52 = tpu.concatenate %48, %51 in 0 : vector<1x256xf32>, vector<1x256xf32> -> vector<2x256xf32>
    %cst_17 = arith.constant dense<0.000000e+00> : vector<2x16xf32>
    %53 = tpu.matmul %52, %24, %cst_17 {dimension_numbers = #tpu.dot_dimension_numbers<[1], [0], [0], [1], [0, 0, 1, 1], [], []>} : vector<2x256xf32>, vector<256x16xf32>, vector<2x16xf32> -> vector<2x16xf32>
    %54 = vector.extract_strided_slice %53 {offsets = [0, 0], sizes = [1, 16], strides = [1, 1]} : vector<2x16xf32> to vector<1x16xf32>
    %cst_18 = arith.constant 3.125000e-02 : f32
    %55 = vector.broadcast %cst_18 : f32 to vector<1x16xf32>
    %56 = arith.mulf %54, %55 : vector<1x16xf32>
    %57 = vector.extract_strided_slice %53 {offsets = [1, 0], sizes = [1, 16], strides = [1, 1]} : vector<2x16xf32> to vector<1x16xf32>
    %cst_19 = arith.constant 3.125000e-02 : f32
    %58 = vector.broadcast %cst_19 : f32 to vector<1x16xf32>
    %59 = arith.mulf %57, %58 : vector<1x16xf32>
    %60 = arith.mulf %56, %56 : vector<1x16xf32>
    %61 = arith.subf %59, %60 : vector<1x16xf32>
    %cst_20 = arith.constant 0.000000e+00 : f32
    %62 = vector.broadcast %cst_20 : f32 to vector<1x16xf32>
    %63 = arith.maximumf %61, %62 : vector<1x16xf32>
    %c0_21 = arith.constant 0 : index
    %c0_22 = arith.constant 0 : index
    %64 = vector.load %arg3[%c0_21, %c0_22] : memref<3x128xf32, #tpu.memory_space<vmem>>, vector<1x16xf32>
    %c1 = arith.constant 1 : index
    %c0_23 = arith.constant 0 : index
    %65 = vector.load %arg3[%c1, %c0_23] : memref<3x128xf32, #tpu.memory_space<vmem>>, vector<1x16xf32>
    %cst_24 = arith.constant 9.99999974E-6 : f32
    %66 = vector.broadcast %cst_24 : f32 to vector<1x16xf32>
    %67 = arith.addf %63, %66 : vector<1x16xf32>
    %68 = math.rsqrt %67 : vector<1x16xf32>
    %69 = arith.mulf %64, %68 : vector<1x16xf32>
    %70 = arith.mulf %56, %69 : vector<1x16xf32>
    %71 = arith.subf %65, %70 : vector<1x16xf32>
    %72 = tpu.concatenate %69, %71 in 0 : vector<1x16xf32>, vector<1x16xf32> -> vector<2x16xf32>
    %cst_25 = arith.constant dense<0.000000e+00> : vector<2x256xf32>
    %73 = tpu.matmul %72, %46, %cst_25 {dimension_numbers = #tpu.dot_dimension_numbers<[1], [0], [0], [1], [0, 0, 1, 1], [], []>} : vector<2x16xf32>, vector<16x256xf32>, vector<2x256xf32> -> vector<2x256xf32>
    %74 = vector.extract_strided_slice %73 {offsets = [0, 0], sizes = [1, 256], strides = [1, 1]} : vector<2x256xf32> to vector<1x256xf32>
    %75 = vector.broadcast %74 : vector<1x256xf32> to vector<2x256xf32>
    %76 = arith.mulf %2, %75 : vector<2x256xf32>
    %77 = vector.extract_strided_slice %73 {offsets = [1, 0], sizes = [1, 256], strides = [1, 1]} : vector<2x256xf32> to vector<1x256xf32>
    %78 = vector.broadcast %77 : vector<1x256xf32> to vector<2x256xf32>
    %79 = arith.addf %76, %78 : vector<2x256xf32>
    %80 = math.tanh %79 : vector<2x256xf32>
    %81 = vector.extract_strided_slice %80 {offsets = [0, 0], sizes = [2, 128], strides = [1, 1]} : vector<2x256xf32> to vector<2x128xf32>
    %82 = vector.extract_strided_slice %80 {offsets = [0, 128], sizes = [2, 128], strides = [1, 1]} : vector<2x256xf32> to vector<2x128xf32>
    %83 = arith.maximumf %81, %82 : vector<2x128xf32>
    %84 = arith.truncf %83 : vector<2x128xf32> to vector<2x128xbf16>
    %c0_26 = arith.constant 0 : index
    %c0_27 = arith.constant 0 : index
    %85 = vector.load %arg4[%c0_26, %c0_27] : memref<128x128xbf16, #tpu.memory_space<vmem>>, vector<128x128xbf16>
    %cst_28 = arith.constant dense<0.000000e+00> : vector<2x128xf32>
    %86 = tpu.matmul %84, %85, %cst_28 {dimension_numbers = #tpu.dot_dimension_numbers<[1], [0], [0], [1], [0, 0, 1, 1], [], []>} : vector<2x128xbf16>, vector<128x128xbf16>, vector<2x128xf32> -> vector<2x128xf32>
    %c2 = arith.constant 2 : index
    %c0_29 = arith.constant 0 : index
    %87 = vector.load %arg3[%c2, %c0_29] : memref<3x128xf32, #tpu.memory_space<vmem>>, vector<1x128xf32>
    %88 = vector.broadcast %87 : vector<1x128xf32> to vector<2x128xf32>
    %89 = arith.addf %86, %88 : vector<2x128xf32>
    %c0_30 = arith.constant 0 : index
    %c0_31 = arith.constant 0 : index
    %90 = vector.load %arg5[%c0_30, %c0_31] : memref<2x128xf32, #tpu.memory_space<vmem>>, vector<2x128xf32>
    tpu.vector_store %arg5[%c0_30, %c0_31], %89 {strides = array<i32>} : memref<2x128xf32, #tpu.memory_space<vmem>>, vector<2x128xf32>,
    return
  }
  func.func @transform_0(%arg0: i32) -> (i32, i32) {
    %c0_i32 = arith.constant 0 : i32
    %c0_i32_0 = arith.constant 0 : i32
    %c0_i32_1 = arith.constant 0 : i32
    return %c0_i32, %c0_i32_0 : i32, i32
  }
  func.func @transform_1(%arg0: i32) -> (i32, i32) {
    %c0_i32 = arith.constant 0 : i32
    %c0_i32_0 = arith.constant 0 : i32
    %c0_i32_1 = arith.constant 0 : i32
    return %c0_i32, %c0_i32_0 : i32, i32
  }
  func.func @transform_2(%arg0: i32) -> (i32, i32) {
    %c0_i32 = arith.constant 0 : i32
    %c0_i32_0 = arith.constant 0 : i32
    %c0_i32_1 = arith.constant 0 : i32
    return %c0_i32, %c0_i32_0 : i32, i32
  }
  func.func @transform_3(%arg0: i32) -> (i32, i32) {
    %c0_i32 = arith.constant 0 : i32
    %c0_i32_0 = arith.constant 0 : i32
    %c0_i32_1 = arith.constant 0 : i32
    return %c0_i32, %c0_i32_0 : i32, i32
  }
  func.func @transform_4(%arg0: i32) -> (i32, i32) {
    %c0_i32 = arith.constant 0 : i32
    %c0_i32_0 = arith.constant 0 : i32
    %c0_i32_1 = arith.constant 0 : i32
    return %c0_i32, %c0_i32_0 : i32, i32
  }
}

</mosaic_0001>

<llo_original>
// kernel: cnn2_forward.1
$region0: #{cnn2_forward.1}
  #allocation0 [shape = 'u32[]', space=smem, size = 0x4, offset = 0x4, fixed_abs, tag = 'smem constant byte address 0x4 - core index']
  #allocation1 [shape = 'u32[144,128]{1,0:T(1,128)}', space=vmem, size = 0x12000, scoped, tag = 'internal scratch']
  %s0 = inlined_call_operand.vmem [shape: bf16[2,64], index: 0, kind: input, shape index: {}]
  %s1 = inlined_call_operand.vmem [shape: bf16[64,256], index: 1, kind: input, shape index: {}]
  %s2 = inlined_call_operand.vmem [shape: f32[3,128], index: 2, kind: input, shape index: {}]
  %s3 = inlined_call_operand.vmem [shape: bf16[128,128], index: 3, kind: input, shape index: {}]
  %s4 = inlined_call_operand.vmem [shape: f32[2,128], index: 4, kind: output, shape index: {}]
  %s5 = sld [smem:[#allocation0]]
  $region26: #{cnn2_forward.1} parent=0
    _
  %s7 = ssub.s32 1, %s5
  %s8 = scalar_select 0, %s7, %s5
  // Predicated region
  $region2: #{cnn2_forward.1} parent=0 // pred_check
    _
  $region3: #{cnn2_forward.1} parent=0 // pred_check_branch
    %10 = sbr.rel (0) target = $region5
  $region4: #{cnn2_forward.1} parent=0 // pred_region
    _
  $region5: #{cnn2_forward.1} parent=0 // pred_fallthru
    _
  // Predicated region
  $region6: #{cnn2_forward.1} parent=0 // pred_check
    _
  $region7: #{cnn2_forward.1} parent=0 // pred_check_branch
    %12 = sbr.rel (0) target = $region9
  $region8: #{cnn2_forward.1} parent=0 // pred_region
    _
  $region9: #{cnn2_forward.1} parent=0 // pred_fallthru
    _
  // Predicated region
  $region10: #{cnn2_forward.1} parent=0 // pred_check
    _
  $region11: #{cnn2_forward.1} parent=0 // pred_check_branch
    %14 = sbr.rel (0) target = $region13
  $region12: #{cnn2_forward.1} parent=0 // pred_region
    _
  $region13: #{cnn2_forward.1} parent=0 // pred_fallthru
    _
  // Predicated region
  $region14: #{cnn2_forward.1} parent=0 // pred_check
    _
  $region15: #{cnn2_forward.1} parent=0 // pred_check_branch
    %16 = sbr.rel (0) target = $region17
  $region16: #{cnn2_forward.1} parent=0 // pred_region
    _
  $region17: #{cnn2_forward.1} parent=0 // pred_fallthru
    _
  %v18 = vld [vmem:[%s0] sm:$0x1]
  %v19 = vld [vmem:[%s1] sm:$0xff]
  %v20 = vld [vmem:[%s1 + $0x8] sm:$0xff]
  %v21 = vld [vmem:[%s1 + $0x10] sm:$0xff]
  %v22 = vld [vmem:[%s1 + $0x18] sm:$0xff]
  %v23 = vld [vmem:[%s1 + $0x20] sm:$0xff]
  %v24 = vld [vmem:[%s1 + $0x28] sm:$0xff]
  %v25 = vld [vmem:[%s1 + $0x30] sm:$0xff]
  %v26 = vld [vmem:[%s1 + $0x38] sm:$0xff]
  %v35 = vunpack.c.l.b16 %v19
  %v36 = vunpack.c.h.b16 %v19
  %v37 = vunpack.c.l.b16 %v20
  %v38 = vunpack.c.h.b16 %v20
  %v39 = vunpack.c.l.b16 %v21
  %v40 = vunpack.c.h.b16 %v21
  %v41 = vunpack.c.l.b16 %v22
  %v42 = vunpack.c.h.b16 %v22
  %v43 = vunpack.c.l.b16 %v23
  %v44 = vunpack.c.h.b16 %v23
  %v45 = vunpack.c.l.b16 %v24
  %v46 = vunpack.c.h.b16 %v24
  %v47 = vunpack.c.l.b16 %v25
  %v48 = vunpack.c.h.b16 %v25
  %v49 = vunpack.c.l.b16 %v26
  %v50 = vunpack.c.h.b16 %v26
  %v51 = vpack.c.b16 %v37, %v35
  %v52 = vpack.c.b16 %v38, %v36
  %v53 = vpack.c.b16 %v41, %v39
  %v54 = vpack.c.b16 %v42, %v40
  %v55 = vpack.c.b16 %v45, %v43
  %v56 = vpack.c.b16 %v46, %v44
  %v57 = vpack.c.b16 %v49, %v47
  %v58 = vpack.c.b16 %v50, %v48
  %vm67 = vcmask 523264
  %v69 = vsel %vm67, %v18, 0
  %71 = vmatprep.subr.bf16.mxu0 %v52
  %72 = vmatpush1.bf16.msra.mxu0 %v51
  %73 = vmatprep.subr.bf16.mxu0 %v54
  %74 = vmatpush1.bf16.msra.mxu0 %v53
  %75 = vmatprep.subr.bf16.mxu0 %v56
  %76 = vmatpush1.bf16.msra.mxu0 %v55
  %77 = vmatprep.subr.bf16.mxu0 %v58
  %78 = vmatpush1.bf16.msra.mxu0 %v57
  %79 = vmatprep.subr.bf16.mxu0 0
  %80 = vmatpush1.bf16.msra.mxu0 0
  %81 = vmatprep.subr.bf16.mxu0 0
  %82 = vmatpush1.bf16.msra.mxu0 0
  %83 = vmatprep.subr.bf16.mxu0 0
  %84 = vmatpush1.bf16.msra.mxu0 0
  %85 = vmatprep.subr.bf16.mxu0 0
  %86 = vmatpush1.bf16.msra.mxu0 0
  %87 = vmatprep.subr.bf16.mxu0 0
  %88 = vmatpush1.bf16.msra.mxu0 0
  %89 = vmatprep.subr.bf16.mxu0 0
  %90 = vmatpush1.bf16.msra.mxu0 0
  %91 = vmatprep.subr.bf16.mxu0 0
  %92 = vmatpush1.bf16.msra.mxu0 0
  %93 = vmatprep.subr.bf16.mxu0 0
  %94 = vmatpush1.bf16.msra.mxu0 0
  %95 = vmatprep.subr.bf16.mxu0 0
  %96 = vmatpush1.bf16.msra.mxu0 0
  %97 = vmatprep.subr.bf16.mxu0 0
  %98 = vmatpush1.bf16.msra.mxu0 0
  %99 = vmatprep.subr.bf16.mxu0 0
  %100 = vmatpush1.bf16.msra.mxu0 0
  %101 = vmatprep.subr.bf16.mxu0 0
  %102 = vmatpush1.bf16.msra.mxu0 0
  %103 = vmatprep.mubr.bf16.mxu0 0
  %104 = vmatmul.mubr.bf16.gmra.mrb[0].mxu0 %v69
  %v105 = vpop.f32.mrb[0].mxu0
  %v106 = vadd.f32 0.0, %v105
  %v107 = vpop.f32.mrb[0].mxu0
  %v108 = vadd.f32 0.0, %v107
  %v109 = vpop.f32.mrb[0].mxu0
  %v110 = vpop.f32.mrb[0].mxu0
  %111 = vdwg.mxu0
  %v112 = vlaneseq
  %v113 = vshrl.u32 %v112, 7
  %v114 = vadd.s32 %v113, 8
  %v115 = vadd.s32 %v113, 16
  %v116 = vadd.s32 %v113, 24
  %v117 = vadd.s32 %v113, 32
  %v118 = vadd.s32 %v113, 40
  %v119 = vadd.s32 %v113, 48
  %v120 = vadd.s32 %v113, 56
  %v121 = vadd.s32 %v113, 64
  %v122 = vadd.s32 %v113, 72
  %v123 = vadd.s32 %v113, 80
  %v124 = vadd.s32 %v113, 88
  %v125 = vadd.s32 %v113, 96
  %v126 = vadd.s32 %v113, 104
  %v127 = vadd.s32 %v113, 112
  %v128 = vadd.s32 %v113, 120
  %v129 = vadd.s32 %v113, 128
  %v130 = vadd.s32 %v113, 136
  %v131 = vadd.s32 %v113, 144
  %v132 = vadd.s32 %v113, 152
  %v133 = vadd.s32 %v113, 160
  %v134 = vadd.s32 %v113, 168
  %v135 = vadd.s32 %v113, 176
  %v136 = vadd.s32 %v113, 184
  %v137 = vadd.s32 %v113, 192
  %v138 = vadd.s32 %v113, 200
  %v139 = vadd.s32 %v113, 208
  %v140 = vadd.s32 %v113, 216
  %v141 = vadd.s32 %v113, 224
  %v142 = vadd.s32 %v113, 232
  %v143 = vadd.s32 %v113, 240
  %v144 = vadd.s32 %v113, 248
  %v145 = vlaneseq
  %v146 = vand.u32 %v145, 127
  %v147 = vmul.u32 %v146, 8
  %vm148 = vcmp.ge.s32.totalorder %v113, %v147
  %vm149 = vcmp.ge.s32.totalorder %v114, %v147
  %vm150 = vcmp.ge.s32.totalorder %v115, %v147
  %vm151 = vcmp.ge.s32.totalorder %v116, %v147
  %vm152 = vcmp.ge.s32.totalorder %v117, %v147
  %vm153 = vcmp.ge.s32.totalorder %v118, %v147
  %vm154 = vcmp.ge.s32.totalorder %v119, %v147
  %vm155 = vcmp.ge.s32.totalorder %v120, %v147
  %vm156 = vcmp.ge.s32.totalorder %v121, %v147
  %vm157 = vcmp.ge.s32.totalorder %v122, %v147
  %vm158 = vcmp.ge.s32.totalorder %v123, %v147
  %vm159 = vcmp.ge.s32.totalorder %v124, %v147
  %vm160 = vcmp.ge.s32.totalorder %v125, %v147
  %vm161 = vcmp.ge.s32.totalorder %v126, %v147
  %vm162 = vcmp.ge.s32.totalorder %v127, %v147
  %vm163 = vcmp.ge.s32.totalorder %v128, %v147
  %vm164 = vcmp.ge.s32.totalorder %v129, %v147
  %vm165 = vcmp.ge.s32.totalorder %v130, %v147
  %vm166 = vcmp.ge.s32.totalorder %v131, %v147
  %vm167 = vcmp.ge.s32.totalorder %v132, %v147
  %vm168 = vcmp.ge.s32.totalorder %v133, %v147
  %vm169 = vcmp.ge.s32.totalorder %v134, %v147
  %vm170 = vcmp.ge.s32.totalorder %v135, %v147
  %vm171 = vcmp.ge.s32.totalorder %v136, %v147
  %vm172 = vcmp.ge.s32.totalorder %v137, %v147
  %vm173 = vcmp.ge.s32.totalorder %v138, %v147
  %vm174 = vcmp.ge.s32.totalorder %v139, %v147
  %vm175 = vcmp.ge.s32.totalorder %v140, %v147
  %vm176 = vcmp.ge.s32.totalorder %v141, %v147
  %vm177 = vcmp.ge.s32.totalorder %v142, %v147
  %vm178 = vcmp.ge.s32.totalorder %v143, %v147
  %vm179 = vcmp.ge.s32.totalorder %v144, %v147
  %v180 = vadd.s32 %v147, 8
  %vm181 = vcmp.lt.s32.totalorder %v113, %v180
  %vm182 = vcmp.lt.s32.totalorder %v114, %v180
  %vm183 = vcmp.lt.s32.totalorder %v115, %v180
  %vm184 = vcmp.lt.s32.totalorder %v116, %v180
  %vm185 = vcmp.lt.s32.totalorder %v117, %v180
  %vm186 = vcmp.lt.s32.totalorder %v118, %v180
  %vm187 = vcmp.lt.s32.totalorder %v119, %v180
  %vm188 = vcmp.lt.s32.totalorder %v120, %v180
  %vm189 = vcmp.lt.s32.totalorder %v121, %v180
  %vm190 = vcmp.lt.s32.totalorder %v122, %v180
  %vm191 = vcmp.lt.s32.totalorder %v123, %v180
  %vm192 = vcmp.lt.s32.totalorder %v124, %v180
  %vm193 = vcmp.lt.s32.totalorder %v125, %v180
  %vm194 = vcmp.lt.s32.totalorder %v126, %v180
  %vm195 = vcmp.lt.s32.totalorder %v127, %v180
  %vm196 = vcmp.lt.s32.totalorder %v128, %v180
  %vm197 = vcmp.lt.s32.totalorder %v129, %v180
  %vm198 = vcmp.lt.s32.totalorder %v130, %v180
  %vm199 = vcmp.lt.s32.totalorder %v131, %v180
  %vm200 = vcmp.lt.s32.totalorder %v132, %v180
  %vm201 = vcmp.lt.s32.totalorder %v133, %v180
  %vm202 = vcmp.lt.s32.totalorder %v134, %v180
  %vm203 = vcmp.lt.s32.totalorder %v135, %v180
  %vm204 = vcmp.lt.s32.totalorder %v136, %v180
  %vm205 = vcmp.lt.s32.totalorder %v137, %v180
  %vm206 = vcmp.lt.s32.totalorder %v138, %v180
  %vm207 = vcmp.lt.s32.totalorder %v139, %v180
  %vm208 = vcmp.lt.s32.totalorder %v140, %v180
  %vm209 = vcmp.lt.s32.totalorder %v141, %v180
  %vm210 = vcmp.lt.s32.totalorder %v142, %v180
  %vm211 = vcmp.lt.s32.totalorder %v143, %v180
  %vm212 = vcmp.lt.s32.totalorder %v144, %v180
  %vm213 = vmand %vm148, %vm181
  %vm214 = vmand %vm149, %vm182
  %vm215 = vmand %vm150, %vm183
  %vm216 = vmand %vm151, %vm184
  %vm217 = vmand %vm152, %vm185
  %vm218 = vmand %vm153, %vm186
  %vm219 = vmand %vm154, %vm187
  %vm220 = vmand %vm155, %vm188
  %vm221 = vmand %vm156, %vm189
  %vm222 = vmand %vm157, %vm190
  %vm223 = vmand %vm158, %vm191
  %vm224 = vmand %vm159, %vm192
  %vm225 = vmand %vm160, %vm193
  %vm226 = vmand %vm161, %vm194
  %vm227 = vmand %vm162, %vm195
  %vm228 = vmand %vm163, %vm196
  %vm229 = vmand %vm164, %vm197
  %vm230 = vmand %vm165, %vm198
  %vm231 = vmand %vm166, %vm199
  %vm232 = vmand %vm167, %vm200
  %vm233 = vmand %vm168, %vm201
  %vm234 = vmand %vm169, %vm202
  %vm235 = vmand %vm170, %vm203
  %vm236 = vmand %vm171, %vm204
  %vm237 = vmand %vm172, %vm205
  %vm238 = vmand %vm173, %vm206
  %vm239 = vmand %vm174, %vm207
  %vm240 = vmand %vm175, %vm208
  %vm241 = vmand %vm176, %vm209
  %vm242 = vmand %vm177, %vm210
  %vm243 = vmand %vm178, %vm211
  %vm244 = vmand %vm179, %vm212
  %v245 = vadd.s32 %v147, 128
  %vm246 = vcmp.ge.s32.totalorder %v113, %v245
  %vm247 = vcmp.ge.s32.totalorder %v114, %v245
  %vm248 = vcmp.ge.s32.totalorder %v115, %v245
  %vm249 = vcmp.ge.s32.totalorder %v116, %v245
  %vm250 = vcmp.ge.s32.totalorder %v117, %v245
  %vm251 = vcmp.ge.s32.totalorder %v118, %v245
  %vm252 = vcmp.ge.s32.totalorder %v119, %v245
  %vm253 = vcmp.ge.s32.totalorder %v120, %v245
  %vm254 = vcmp.ge.s32.totalorder %v121, %v245
  %vm255 = vcmp.ge.s32.totalorder %v122, %v245
  %vm256 = vcmp.ge.s32.totalorder %v123, %v245
  %vm257 = vcmp.ge.s32.totalorder %v124, %v245
  %vm258 = vcmp.ge.s32.totalorder %v125, %v245
  %vm259 = vcmp.ge.s32.totalorder %v126, %v245
  %vm260 = vcmp.ge.s32.totalorder %v127, %v245
  %vm261 = vcmp.ge.s32.totalorder %v128, %v245
  %vm262 = vcmp.ge.s32.totalorder %v129, %v245
  %vm263 = vcmp.ge.s32.totalorder %v130, %v245
  %vm264 = vcmp.ge.s32.totalorder %v131, %v245
  %vm265 = vcmp.ge.s32.totalorder %v132, %v245
  %vm266 = vcmp.ge.s32.totalorder %v133, %v245
  %vm267 = vcmp.ge.s32.totalorder %v134, %v245
  %vm268 = vcmp.ge.s32.totalorder %v135, %v245
  %vm269 = vcmp.ge.s32.totalorder %v136, %v245
  %vm270 = vcmp.ge.s32.totalorder %v137, %v245
  %vm271 = vcmp.ge.s32.totalorder %v138, %v245
  %vm272 = vcmp.ge.s32.totalorder %v139, %v245
  %vm273 = vcmp.ge.s32.totalorder %v140, %v245
  %vm274 = vcmp.ge.s32.totalorder %v141, %v245
  %vm275 = vcmp.ge.s32.totalorder %v142, %v245
  %vm276 = vcmp.ge.s32.totalorder %v143, %v245
  %vm277 = vcmp.ge.s32.totalorder %v144, %v245
  %v278 = vadd.s32 %v245, 8
  %vm279 = vcmp.lt.s32.totalorder %v113, %v278
  %vm280 = vcmp.lt.s32.totalorder %v114, %v278
  %vm281 = vcmp.lt.s32.totalorder %v115, %v278
  %vm282 = vcmp.lt.s32.totalorder %v116, %v278
  %vm283 = vcmp.lt.s32.totalorder %v117, %v278
  %vm284 = vcmp.lt.s32.totalorder %v118, %v278
  %vm285 = vcmp.lt.s32.totalorder %v119, %v278
  %vm286 = vcmp.lt.s32.totalorder %v120, %v278
  %vm287 = vcmp.lt.s32.totalorder %v121, %v278
  %vm288 = vcmp.lt.s32.totalorder %v122, %v278
  %vm289 = vcmp.lt.s32.totalorder %v123, %v278
  %vm290 = vcmp.lt.s32.totalorder %v124, %v278
  %vm291 = vcmp.lt.s32.totalorder %v125, %v278
  %vm292 = vcmp.lt.s32.totalorder %v126, %v278
  %vm293 = vcmp.lt.s32.totalorder %v127, %v278
  %vm294 = vcmp.lt.s32.totalorder %v128, %v278
  %vm295 = vcmp.lt.s32.totalorder %v129, %v278
  %vm296 = vcmp.lt.s32.totalorder %v130, %v278
  %vm297 = vcmp.lt.s32.totalorder %v131, %v278
  %vm298 = vcmp.lt.s32.totalorder %v132, %v278
  %vm299 = vcmp.lt.s32.totalorder %v133, %v278
  %vm300 = vcmp.lt.s32.totalorder %v134, %v278
  %vm301 = vcmp.lt.s32.totalorder %v135, %v278
  %vm302 = vcmp.lt.s32.totalorder %v136, %v278
  %vm303 = vcmp.lt.s32.totalorder %v137, %v278
  %vm304 = vcmp.lt.s32.totalorder %v138, %v278
  %vm305 = vcmp.lt.s32.totalorder %v139, %v278
  %vm306 = vcmp.lt.s32.totalorder %v140, %v278
  %vm307 = vcmp.lt.s32.totalorder %v141, %v278
  %vm308 = vcmp.lt.s32.totalorder %v142, %v278
  %vm309 = vcmp.lt.s32.totalorder %v143, %v278
  %vm310 = vcmp.lt.s32.totalorder %v144, %v278
  %vm311 = vmand %vm246, %vm279
  %vm312 = vmand %vm247, %vm280
  %vm313 = vmand %vm248, %vm281
  %vm314 = vmand %vm249, %vm282
  %vm315 = vmand %vm250, %vm283
  %vm316 = vmand %vm251, %vm284
  %vm317 = vmand %vm252, %vm285
  %vm318 = vmand %vm253, %vm286
  %vm319 = vmand %vm254, %vm287
  %vm320 = vmand %vm255, %vm288
  %vm321 = vmand %vm256, %vm289
  %vm322 = vmand %vm257, %vm290
  %vm323 = vmand %vm258, %vm291
  %vm324 = vmand %vm259, %vm292
  %vm325 = vmand %vm260, %vm293
  %vm326 = vmand %vm261, %vm294
  %vm327 = vmand %vm262, %vm295
  %vm328 = vmand %vm263, %vm296
  %vm329 = vmand %vm264, %vm297
  %vm330 = vmand %vm265, %vm298
  %vm331 = vmand %vm266, %vm299
  %vm332 = vmand %vm267, %vm300
  %vm333 = vmand %vm268, %vm301
  %vm334 = vmand %vm269, %vm302
  %vm335 = vmand %vm270, %vm303
  %vm336 = vmand %vm271, %vm304
  %vm337 = vmand %vm272, %vm305
  %vm338 = vmand %vm273, %vm306
  %vm339 = vmand %vm274, %vm307
  %vm340 = vmand %vm275, %vm308
  %vm341 = vmand %vm276, %vm309
  %vm342 = vmand %vm277, %vm310
  %vm343 = vmor %vm213, %vm311
  %vm344 = vmor %vm214, %vm312
  %vm345 = vmor %vm215, %vm313
  %vm346 = vmor %vm216, %vm314
  %vm347 = vmor %vm217, %vm315
  %vm348 = vmor %vm218, %vm316
  %vm349 = vmor %vm219, %vm317
  %vm350 = vmor %vm220, %vm318
  %vm351 = vmor %vm221, %vm319
  %vm352 = vmor %vm222, %vm320
  %vm353 = vmor %vm223, %vm321
  %vm354 = vmor %vm224, %vm322
  %vm355 = vmor %vm225, %vm323
  %vm356 = vmor %vm226, %vm324
  %vm357 = vmor %vm227, %vm325
  %vm358 = vmor %vm228, %vm326
  %vm359 = vmor %vm229, %vm327
  %vm360 = vmor %vm230, %vm328
  %vm361 = vmor %vm231, %vm329
  %vm362 = vmor %vm232, %vm330
  %vm363 = vmor %vm233, %vm331
  %vm364 = vmor %vm234, %vm332
  %vm365 = vmor %vm235, %vm333
  %vm366 = vmor %vm236, %vm334
  %vm367 = vmor %vm237, %vm335
  %vm368 = vmor %vm238, %vm336
  %vm369 = vmor %vm239, %vm337
  %vm370 = vmor %vm240, %vm338
  %vm371 = vmor %vm241, %vm339
  %vm372 = vmor %vm242, %vm340
  %vm373 = vmor %vm243, %vm341
  %vm374 = vmor %vm244, %vm342
  %v375 = vsel %vm343, 1.0, 0.0
  %v376 = vsel %vm344, 1.0, 0.0
  %v377 = vsel %vm345, 1.0, 0.0
  %v378 = vsel %vm346, 1.0, 0.0
  %v379 = vsel %vm347, 1.0, 0.0
  %v380 = vsel %vm348, 1.0, 0.0
  %v381 = vsel %vm349, 1.0, 0.0
  %v382 = vsel %vm350, 1.0, 0.0
  %v383 = vsel %vm351, 1.0, 0.0
  %v384 = vsel %vm352, 1.0, 0.0
  %v385 = vsel %vm353, 1.0, 0.0
  %v386 = vsel %vm354, 1.0, 0.0
  %v387 = vsel %vm355, 1.0, 0.0
  %v388 = vsel %vm356, 1.0, 0.0
  %v389 = vsel %vm357, 1.0, 0.0
  %v390 = vsel %vm358, 1.0, 0.0
  %v391 = vsel %vm359, 1.0, 0.0
  %v392 = vsel %vm360, 1.0, 0.0
  %v393 = vsel %vm361, 1.0, 0.0
  %v394 = vsel %vm362, 1.0, 0.0
  %v395 = vsel %vm363, 1.0, 0.0
  %v396 = vsel %vm364, 1.0, 0.0
  %v397 = vsel %vm365, 1.0, 0.0
  %v398 = vsel %vm366, 1.0, 0.0
  %v399 = vsel %vm367, 1.0, 0.0
  %v400 = vsel %vm368, 1.0, 0.0
  %v401 = vsel %vm369, 1.0, 0.0
  %v402 = vsel %vm370, 1.0, 0.0
  %v403 = vsel %vm371, 1.0, 0.0
  %v404 = vsel %vm372, 1.0, 0.0
  %v405 = vsel %vm373, 1.0, 0.0
  %v406 = vsel %vm374, 1.0, 0.0
  %v407 = vadd.s32 %v146, 128
  %v408 = vmul.u32 %v113, 8
  %v409 = vmul.u32 %v114, 8
  %vm410 = vcmp.ge.s32.totalorder %v146, %v408
  %vm411 = vcmp.ge.s32.totalorder %v407, %v408
  %vm412 = vcmp.ge.s32.totalorder %v146, %v409
  %vm413 = vcmp.ge.s32.totalorder %v407, %v409
  %v414 = vadd.s32 %v408, 8
  %v415 = vadd.s32 %v409, 8
  %vm416 = vcmp.lt.s32.totalorder %v146, %v414
  %vm417 = vcmp.lt.s32.totalorder %v407, %v414
  %vm418 = vcmp.lt.s32.totalorder %v146, %v415
  %vm419 = vcmp.lt.s32.totalorder %v407, %v415
  %vm420 = vmand %vm410, %vm416
  %vm421 = vmand %vm411, %vm417
  %vm422 = vmand %vm412, %vm418
  %vm423 = vmand %vm413, %vm419
  %v424 = vadd.s32 %v408, 128
  %v425 = vadd.s32 %v409, 128
  %vm426 = vcmp.ge.s32.totalorder %v146, %v424
  %vm427 = vcmp.ge.s32.totalorder %v407, %v424
  %vm428 = vcmp.ge.s32.totalorder %v146, %v425
  %vm429 = vcmp.ge.s32.totalorder %v407, %v425
  %v430 = vadd.s32 %v424, 8
  %v431 = vadd.s32 %v425, 8
  %vm432 = vcmp.lt.s32.totalorder %v146, %v430
  %vm433 = vcmp.lt.s32.totalorder %v407, %v430
  %vm434 = vcmp.lt.s32.totalorder %v146, %v431
  %vm435 = vcmp.lt.s32.totalorder %v407, %v431
  %vm436 = vmand %vm426, %vm432
  %vm437 = vmand %vm427, %vm433
  %vm438 = vmand %vm428, %vm434
  %vm439 = vmand %vm429, %vm435
  %vm440 = vmor %vm420, %vm436
  %vm441 = vmor %vm421, %vm437
  %vm442 = vmor %vm422, %vm438
  %vm443 = vmor %vm423, %vm439
  %v444 = vsel %vm440, 1.0, 0.0
  %v445 = vsel %vm441, 1.0, 0.0
  %v446 = vsel %vm442, 1.0, 0.0
  %v447 = vsel %vm443, 1.0, 0.0
  %vm448 = vcmask 1041408
  %v449 = vsel %vm448, %v106, 0.0
  %v450 = vrot.slane %v449, 4
  %v451 = vadd.f32 %v449, %v450
  %v452 = vrot.slane %v451, 2
  %v453 = vadd.f32 %v451, %v452
  %v454 = vrot.slane %v453, 1
  %v455 = vadd.f32 %v453, %v454
  %v456 = vsel %vm448, %v108, 0.0
  %v457 = vrot.slane %v456, 4
  %v458 = vadd.f32 %v456, %v457
  %v459 = vrot.slane %v458, 2
  %v460 = vadd.f32 %v458, %v459
  %v461 = vrot.slane %v460, 1
  %v462 = vadd.f32 %v460, %v461
  %v463 = vmul.f32 %v106, %v106
  %v464 = vmul.f32 %v108, %v108
  %v465 = vsel %vm448, %v463, 0.0
  %v466 = vrot.slane %v465, 4
  %v467 = vadd.f32 %v465, %v466
  %v468 = vrot.slane %v467, 2
  %v469 = vadd.f32 %v467, %v468
  %v470 = vrot.slane %v469, 1
  %v471 = vadd.f32 %v469, %v470
  %v472 = vsel %vm448, %v464, 0.0
  %v473 = vrot.slane %v472, 4
  %v474 = vadd.f32 %v472, %v473
  %v475 = vrot.slane %v474, 2
  %v476 = vadd.f32 %v474, %v475
  %v477 = vrot.slane %v476, 1
  %v478 = vadd.f32 %v476, %v477
  %vm479 = vcmask 1040384
  %v480 = vsel %vm479, %v455, %v471
  %v481 = vsel %vm479, %v462, %v478
  %482 = vmatprep.subr.mxu0 0.0
  %483 = vmatpush1.msra.mxu0 %v375
  %484 = vmatprep.subr.mxu0 0.0
  %485 = vmatpush1.msra.mxu0 %v376
  %486 = vmatprep.subr.mxu0 0.0
  %487 = vmatpush1.msra.mxu0 %v377
  %488 = vmatprep.subr.mxu0 0.0
  %489 = vmatpush1.msra.mxu0 %v378
  %490 = vmatprep.subr.mxu0 0.0
  %491 = vmatpush1.msra.mxu0 %v379
  %492 = vmatprep.subr.mxu0 0.0
  %493 = vmatpush1.msra.mxu0 %v380
  %494 = vmatprep.subr.mxu0 0.0
  %495 = vmatpush1.msra.mxu0 %v381
  %496 = vmatprep.subr.mxu0 0.0
  %497 = vmatpush1.msra.mxu0 %v382
  %498 = vmatprep.subr.mxu0 0.0
  %499 = vmatpush1.msra.mxu0 %v383
  %500 = vmatprep.subr.mxu0 0.0
  %501 = vmatpush1.msra.mxu0 %v384
  %502 = vmatprep.subr.mxu0 0.0
  %503 = vmatpush1.msra.mxu0 %v385
  %504 = vmatprep.subr.mxu0 0.0
  %505 = vmatpush1.msra.mxu0 %v386
  %506 = vmatprep.subr.mxu0 0.0
  %507 = vmatpush1.msra.mxu0 %v387
  %508 = vmatprep.subr.mxu0 0.0
  %509 = vmatpush1.msra.mxu0 %v388
  %510 = vmatprep.subr.mxu0 0.0
  %511 = vmatpush1.msra.mxu0 %v389
  %512 = vmatprep.subr.mxu0 0.0
  %513 = vmatpush1.msra.mxu0 %v390
  %514 = vmatprep.subr.mxu0 0.0
  %515 = vmatpush1.msra.mxu0 %v391
  %516 = vmatprep.subr.mxu0 0.0
  %517 = vmatpush1.msra.mxu0 %v392
  %518 = vmatprep.subr.mxu0 0.0
  %519 = vmatpush1.msra.mxu0 %v393
  %520 = vmatprep.subr.mxu0 0.0
  %521 = vmatpush1.msra.mxu0 %v394
  %522 = vmatprep.subr.mxu0 0.0
  %523 = vmatpush1.msra.mxu0 %v395
  %524 = vmatprep.subr.mxu0 0.0
  %525 = vmatpush1.msra.mxu0 %v396
  %526 = vmatprep.subr.mxu0 0.0
  %527 = vmatpush1.msra.mxu0 %v397
  %528 = vmatprep.subr.mxu0 0.0
  %529 = vmatpush1.msra.mxu0 %v398
  %530 = vmatprep.subr.mxu0 0.0
  %531 = vmatpush1.msra.mxu0 %v399
  %532 = vmatprep.subr.mxu0 0.0
  %533 = vmatpush1.msra.mxu0 %v400
  %534 = vmatprep.subr.mxu0 0.0
  %535 = vmatpush1.msra.mxu0 %v401
  %536 = vmatprep.subr.mxu0 0.0
  %537 = vmatpush1.msra.mxu0 %v402
  %538 = vmatprep.subr.mxu0 0.0
  %539 = vmatpush1.msra.mxu0 %v403
  %540 = vmatprep.subr.mxu0 0.0
  %541 = vmatpush1.msra.mxu0 %v404
  %542 = vmatprep.subr.mxu0 0.0
  %543 = vmatpush1.msra.mxu0 %v405
  %544 = vmatprep.subr.mxu0 0.0
  %545 = vmatpush1.msra.mxu0 %v406
  %546 = vmatprep.mubr.f32.mxu0 %v481
  %547 = vmatmul.mubr.f32.gmra.mrb[0].mxu0 %v480
  %v548 = vpop.f32.mrb[0].mxu0
  %v549 = vadd.f32 0.0, %v548
  %v550 = vpop.f32.mrb[0].mxu0
  %551 = vdwg.mxu0
  %v552 = vmul.f32 %v549, 0.03125
  %v553 = vmul.f32 %v552, %v552
  %v555 = vrot.slane %v553, 7
  %v557 = vsub.f32 %v552, %v555
  %v558 = vmax.f32 %v557, 0.0
  %v559 = vld [vmem:[%s2] sm:$0x1]
  %v560 = vld [vmem:[%s2 + $0x1] sm:$0x1]
  %v561 = vadd.f32 %v558, 1e-05
  %v562 = vrsqrt.pop %v561
  %v564 = vrot.slane %v562, 1
  %v566 = vmul.f32 %v559, %v564
  %v567 = vmul.f32 %v552, %v566
  %v568 = vsub.f32 %v560, %v567
  %v570 = vrot.slane %v568, 7
  %v572 = vsel %vm479, %v566, %v570
  %vm573 = vcmask 130048
  %v575 = vsel %vm573, %v572, 0
  %577 = vmatprep.subr.mxu0 %v445
  %578 = vmatpush1.msra.mxu0 %v444
  %579 = vmatprep.subr.mxu0 %v447
  %580 = vmatpush1.msra.mxu0 %v446
  %581 = vmatprep.subr.mxu0 0.0
  %582 = vmatpush1.msra.mxu0 0.0
  %583 = vmatprep.subr.mxu0 0.0
  %584 = vmatpush1.msra.mxu0 0.0
  %585 = vmatprep.subr.mxu0 0.0
  %586 = vmatpush1.msra.mxu0 0.0
  %587 = vmatprep.subr.mxu0 0.0
  %588 = vmatpush1.msra.mxu0 0.0
  %589 = vmatprep.subr.mxu0 0.0
  %590 = vmatpush1.msra.mxu0 0.0
  %591 = vmatprep.subr.mxu0 0.0
  %592 = vmatpush1.msra.mxu0 0.0
  %593 = vmatprep.subr.mxu0 0.0
  %594 = vmatpush1.msra.mxu0 0.0
  %595 = vmatprep.subr.mxu0 0.0
  %596 = vmatpush1.msra.mxu0 0.0
  %597 = vmatprep.subr.mxu0 0.0
  %598 = vmatpush1.msra.mxu0 0.0
  %599 = vmatprep.subr.mxu0 0.0
  %600 = vmatpush1.msra.mxu0 0.0
  %601 = vmatprep.subr.mxu0 0.0
  %602 = vmatpush1.msra.mxu0 0.0
  %603 = vmatprep.subr.mxu0 0.0
  %604 = vmatpush1.msra.mxu0 0.0
  %605 = vmatprep.subr.mxu0 0.0
  %606 = vmatpush1.msra.mxu0 0.0
  %607 = vmatprep.subr.mxu0 0.0
  %608 = vmatpush1.msra.mxu0 0.0
  %609 = vmatprep.subr.mxu0 0.0
  %610 = vmatpush1.msra.mxu0 0.0
  %611 = vmatprep.subr.mxu0 0.0
  %612 = vmatpush1.msra.mxu0 0.0
  %613 = vmatprep.subr.mxu0 0.0
  %614 = vmatpush1.msra.mxu0 0.0
  %615 = vmatprep.subr.mxu0 0.0
  %616 = vmatpush1.msra.mxu0 0.0
  %617 = vmatprep.subr.mxu0 0.0
  %618 = vmatpush1.msra.mxu0 0.0
  %619 = vmatprep.subr.mxu0 0.0
  %620 = vmatpush1.msra.mxu0 0.0
  %621 = vmatprep.subr.mxu0 0.0
  %622 = vmatpush1.msra.mxu0 0.0
  %623 = vmatprep.subr.mxu0 0.0
  %624 = vmatpush1.msra.mxu0 0.0
  %625 = vmatprep.subr.mxu0 0.0
  %626 = vmatpush1.msra.mxu0 0.0
  %627 = vmatprep.subr.mxu0 0.0
  %628 = vmatpush1.msra.mxu0 0.0
  %629 = vmatprep.subr.mxu0 0.0
  %630 = vmatpush1.msra.mxu0 0.0
  %631 = vmatprep.subr.mxu0 0.0
  %632 = vmatpush1.msra.mxu0 0.0
  %633 = vmatprep.subr.mxu0 0.0
  %634 = vmatpush1.msra.mxu0 0.0
  %635 = vmatprep.subr.mxu0 0.0
  %636 = vmatpush1.msra.mxu0 0.0
  %637 = vmatprep.subr.mxu0 0.0
  %638 = vmatpush1.msra.mxu0 0.0
  %639 = vmatprep.subr.mxu0 0.0
  %640 = vmatpush1.msra.mxu0 0.0
  %641 = vmatprep.mubr.f32.mxu0 0.0
  %642 = vmatmul.mubr.f32.gmra.mrb[0].mxu0 %v575
  %v643 = vpop.f32.mrb[0].mxu0
  %v644 = vadd.f32 0.0, %v643
  %v645 = vpop.f32.mrb[0].mxu0
  %v646 = vadd.f32 0.0, %v645
  %647 = vdwg.mxu0
  %v648 = vlaneseq
  %v649 = vshrl.u32 %v648, 7
  %v650 = vsub.s32 0, %v649
  %v651 = vrot.slane %v644, %v650
  %v652 = vlaneseq
  %v653 = vshrl.u32 %v652, 7
  %v654 = vsub.s32 0, %v653
  %v655 = vrot.slane %v646, %v654
  %v656 = vmul.f32 %v106, %v651
  %v657 = vmul.f32 %v108, %v655
  %v658 = vlaneseq
  %v659 = vshrl.u32 %v658, 7
  %v660 = vsub.s32 1, %v659
  %v661 = vrot.slane %v644, %v660
  %v662 = vlaneseq
  %v663 = vshrl.u32 %v662, 7
  %v664 = vsub.s32 1, %v663
  %v665 = vrot.slane %v646, %v664
  %v666 = vadd.f32 %v656, %v661
  %v667 = vadd.f32 %v657, %v665
  %v668 = vtanh.pop %v666
  %v669 = vtanh.pop %v667
  %v670 = vmax.f32 %v668, %v669
  %v671 = vpack.c.bf16 %v670, %v670
  %v672 = vld [vmem:[%s3] sm:$0xf]
  %v673 = vld [vmem:[%s3 + $0x4] sm:$0xf]
  %v674 = vld [vmem:[%s3 + $0x8] sm:$0xf]
  %v675 = vld [vmem:[%s3 + $0xc] sm:$0xf]
  %v676 = vld [vmem:[%s3 + $0x10] sm:$0xf]
  %v677 = vld [vmem:[%s3 + $0x14] sm:$0xf]
  %v678 = vld [vmem:[%s3 + $0x18] sm:$0xf]
  %v679 = vld [vmem:[%s3 + $0x1c] sm:$0xf]
  %v680 = vld [vmem:[%s3 + $0x20] sm:$0xf]
  %v681 = vld [vmem:[%s3 + $0x24] sm:$0xf]
  %v682 = vld [vmem:[%s3 + $0x28] sm:$0xf]
  %v683 = vld [vmem:[%s3 + $0x2c] sm:$0xf]
  %v684 = vld [vmem:[%s3 + $0x30] sm:$0xf]
  %v685 = vld [vmem:[%s3 + $0x34] sm:$0xf]
  %v686 = vld [vmem:[%s3 + $0x38] sm:$0xf]
  %v687 = vld [vmem:[%s3 + $0x3c] sm:$0xf]
  %v688 = vld [vmem:[%s2 + $0x2] sm:$0x1]
  %v689 = vlaneseq
  %v690 = vshrl.u32 %v689, 7
  %v691 = vsub.s32 0, %v690
  %v692 = vrot.slane %v688, %v691
  %v709 = vunpack.c.l.b16 %v672
  %v710 = vunpack.c.l.b16 %v673
  %v711 = vunpack.c.l.b16 %v674
  %v712 = vunpack.c.l.b16 %v675
  %v713 = vunpack.c.l.b16 %v676
  %v714 = vunpack.c.l.b16 %v677
  %v715 = vunpack.c.l.b16 %v678
  %v716 = vunpack.c.l.b16 %v679
  %v717 = vunpack.c.l.b16 %v680
  %v718 = vunpack.c.l.b16 %v681
  %v719 = vunpack.c.l.b16 %v682
  %v720 = vunpack.c.l.b16 %v683
  %v721 = vunpack.c.l.b16 %v684
  %v722 = vunpack.c.l.b16 %v685
  %v723 = vunpack.c.l.b16 %v686
  %v724 = vunpack.c.l.b16 %v687
  %v725 = vpack.c.b16 %v710, %v709
  %v726 = vpack.c.b16 %v712, %v711
  %v727 = vpack.c.b16 %v714, %v713
  %v728 = vpack.c.b16 %v716, %v715
  %v729 = vpack.c.b16 %v718, %v717
  %v730 = vpack.c.b16 %v720, %v719
  %v731 = vpack.c.b16 %v722, %v721
  %v732 = vpack.c.b16 %v724, %v723
  %741 = vmatprep.subr.bf16.mxu0 0
  %742 = vmatpush1.bf16.msra.mxu0 %v725
  %743 = vmatprep.subr.bf16.mxu0 0
  %744 = vmatpush1.bf16.msra.mxu0 %v726
  %745 = vmatprep.subr.bf16.mxu0 0
  %746 = vmatpush1.bf16.msra.mxu0 %v727
  %747 = vmatprep.subr.bf16.mxu0 0
  %748 = vmatpush1.bf16.msra.mxu0 %v728
  %749 = vmatprep.subr.bf16.mxu0 0
  %750 = vmatpush1.bf16.msra.mxu0 %v729
  %751 = vmatprep.subr.bf16.mxu0 0
  %752 = vmatpush1.bf16.msra.mxu0 %v730
  %753 = vmatprep.subr.bf16.mxu0 0
  %754 = vmatpush1.bf16.msra.mxu0 %v731
  %755 = vmatprep.subr.bf16.mxu0 0
  %756 = vmatpush1.bf16.msra.mxu0 %v732
  %757 = vmatprep.subr.bf16.mxu0 0
  %758 = vmatpush1.bf16.msra.mxu0 0
  %759 = vmatprep.subr.bf16.mxu0 0
  %760 = vmatpush1.bf16.msra.mxu0 0
  %761 = vmatprep.subr.bf16.mxu0 0
  %762 = vmatpush1.bf16.msra.mxu0 0
  %763 = vmatprep.subr.bf16.mxu0 0
  %764 = vmatpush1.bf16.msra.mxu0 0
  %765 = vmatprep.subr.bf16.mxu0 0
  %766 = vmatpush1.bf16.msra.mxu0 0
  %767 = vmatprep.subr.bf16.mxu0 0
  %768 = vmatpush1.bf16.msra.mxu0 0
  %769 = vmatprep.subr.bf16.mxu0 0
  %770 = vmatpush1.bf16.msra.mxu0 0
  %771 = vmatprep.subr.bf16.mxu0 0
  %772 = vmatpush1.bf16.msra.mxu0 0
  %773 = vmatprep.mubr.bf16.mxu0 0
  %774 = vmatmul.mubr.bf16.gmra.mrb[0].mxu0 %v671
  %v775 = vpop.f32.mrb[0].mxu0
  %v776 = vadd.f32 %v692, %v775
  %v777 = vpop.f32.mrb[0].mxu0
  %v778 = vpop.f32.mrb[0].mxu0
  %v779 = vpop.f32.mrb[0].mxu0
  %780 = vdwg.mxu0
  %781 = vst [vmem:[%s4] sm:$0x3] %v776
  // Predicated region
  $region18: #{cnn2_forward.1} parent=0 // pred_check
    _
  $region19: #{cnn2_forward.1} parent=0 // pred_check_branch
    %783 = sbr.rel (0) target = $region21
  $region20: #{cnn2_forward.1} parent=0 // pred_region
    _
  $region21: #{cnn2_forward.1} parent=0 // pred_fallthru
    _
  // Predicated region
  $region22: #{cnn2_forward.1} parent=0 // pred_check
    _
  $region23: #{cnn2_forward.1} parent=0 // pred_check_branch
    %785 = sbr.rel (0) target = $region25
  $region24: #{cnn2_forward.1} parent=0 // pred_region
    _
  $region25: #{cnn2_forward.1} parent=0 // pred_fallthru
    _

</llo_original>
